<compile_context>
chip_gen: v7x
topology: tpu7x:2x2x1
jax: 0.10.0
libtpu: 0.0.40
codegen_flags: <defaults>
</compile_context>

<pallas_src>
import functools

import jax
import jax.numpy as jnp
from jax.experimental import pallas as pl
from jax.experimental.pallas import tpu as pltpu

NUM_HIGH_WAY = 2  # matches the module's hard-coded highway depth


def _round_up(n, m):
    return ((n + m - 1) // m) * m


def _pad2(a, rows, cols):
    return jnp.pad(a, ((0, rows - a.shape[0]), (0, cols - a.shape[1])))


def _vmem_capacity_bytes():
    try:
        info = pltpu.get_tpu_info()
        return int(getattr(info, "vmem_capacity_bytes", 64 << 20))
    except Exception:
        return 64 << 20  # conservative (v7x per-TC) fallback


def _choose_tile_b(batch, requested):
    # Cap at ~B/2 so the "parallel" batch grid has >= 2 steps whenever the
    # batch allows -> both v7x TensorCores get work (harmless on v5e/v6e).
    tb = min(int(requested), _round_up((batch + 1) // 2, 8))
    return max(8, _round_up(tb, 8))


def _x_block_spec(tile_b, hp, n_buf):
    idx = lambda i: (i, 0)
    if n_buf > 2:
        try:
            return pl.BlockSpec((tile_b, hp), idx,
                                pipeline_mode=pl.Buffered(n_buf))
        except TypeError:  # jax without pipeline_mode support
            pass
    return pl.BlockSpec((tile_b, hp), idx)


# --------------------------- one-time weight prep ---------------------------

def prepare_params(params, mxu_dtype=jnp.bfloat16):
    """Fuse / pad the module weights into kernel-ready constants (one time).

    Returns a flat tuple of arrays; every static quantity the kernel needs is
    derivable from their shapes/dtypes, so the result passes through jit as a
    plain pytree argument.
    """
    H = params["gate_w"][0].shape[0]
    HP = _round_up(H, 128)                       # padded hidden (lane aligned)
    P2 = params["prototype"].shape[1]            # 2 * PROTOTYPE_NUM
    LP = _round_up(P2, 128)                      # padded prototype lanes

    fused = []
    for layer in range(NUM_HIGH_WAY):
        wg = _pad2(params["gate_w"][layer], HP, HP)
        wn = _pad2(params["nonlinear_w"][layer], HP, HP)
        wl = _pad2(params["linear_w"][layer], HP, HP)
        w = jnp.concatenate([wg, wn, wl], axis=1).astype(mxu_dtype)   # (HP,3HP)
        bg = _pad2(params["gate_b"][layer], 1, HP)
        bn = _pad2(params["nonlinear_b"][layer], 1, HP)
        bl = _pad2(params["linear_b"][layer], 1, HP)
        b = jnp.concatenate([bg, bn, bl], axis=1).astype(jnp.float32)  # (1,3HP)
        fused += [w, b]

    # Prototype padded on both axes; MXU sees it in mxu_dtype.  ||p||^2 is
    # computed from the (rounded) prototype the MXU actually multiplies, so
    # dist == ||h - p_mxu||^2 up to f32 rounding.  Padded lanes get a huge
    # ||p||^2 so they can never win the per-row min, and w3d = 0 so they never
    # leak into the logit reduce (no inf*0 NaNs: 1e30 is finite).
    prtt_pad = _pad2(params["prototype"].astype(jnp.float32),
                     HP, LP).astype(mxu_dtype)                         # (HP,LP)
    p_eff = prtt_pad.astype(jnp.float32)
    p_sq = jnp.sum(p_eff * p_eff, axis=0, keepdims=True)               # (1,LP)
    lane_pad = jnp.arange(LP)[None, :] >= P2
    p_sq = jnp.where(lane_pad, jnp.float32(1e30), p_sq)

    w3 = params["out3_w"].astype(jnp.float32)                          # (2P,2)
    b3 = params["out3_b"].astype(jnp.float32)                          # (1,2)
    w3d = jnp.zeros((1, LP), jnp.float32).at[0, :P2].set(w3[:, 0] - w3[:, 1])
    b3d = (b3[0, 0] - b3[0, 1]).reshape(1, 1)

    return (fused[0], fused[1], fused[2], fused[3], prtt_pad, p_sq, w3d, b3d)


# --------------------------------- kernel -----------------------------------

def _make_kernel(HP, tile_b, batch):
    def kernel(x_ref, w0_ref, b0_ref, w1_ref, b1_ref,
               prtt_ref, psq_ref, w3d_ref, b3d_ref,
               probs_ref, loss_ref):

        def highway(h, w_ref, b_ref):
            # one fused MXU matmul: [gate | nonlinear | linear]; bias/epilogue
            # in f32 (preferred_element_type), operands in w_ref.dtype.
            z = jnp.dot(h.astype(w_ref.dtype), w_ref[...],
                        preferred_element_type=jnp.float32) + b_ref[...]
            g = jax.nn.sigmoid(z[:, 0:HP])
            n = jnp.maximum(z[:, HP:2 * HP], 0.0)
            lin = z[:, 2 * HP:3 * HP]
            # g*n + (1-g)*lin rewritten with one fewer multiply / temporary.
            return lin + g * (n - lin)

        h = highway(x_ref[...], w0_ref, b0_ref)
        h = highway(h, w1_ref, b1_ref)

        # Squared distance to every prototype column: ||h||^2 - 2 h.p + ||p||^2
        # (||p||^2 precomputed; clamp guards against cancellation < 0).
        h_sq = jnp.sum(h * h, axis=1, keepdims=True)                   # (T,1)
        hp = jnp.dot(h.astype(prtt_ref.dtype), prtt_ref[...],
                     preferred_element_type=jnp.float32)               # (T,LP)
        dist = jnp.maximum(h_sq - 2.0 * hp + psq_ref[...], 0.0)        # (T,LP)

        # 2-class softmax(out3(dist)) == sigmoid(logit0 - logit1): the (2P,2)
        # matmul is a VPU multiply + lane reduce (padded lanes have w3d = 0).
        ld = jnp.sum(dist * w3d_ref[...], axis=1,
                     keepdims=True) + b3d_ref[...]                     # (T,1)
        p0 = jax.nn.sigmoid(ld)
        p1 = 1.0 - p0

        lane = jax.lax.broadcasted_iota(jnp.int32, (tile_b, 8), 1)
        probs_ref[...] = jnp.where(lane == 0, p0,
                                   jnp.where(lane == 1, p1, 0.0))

        # Matching loss: per-tile partial sum of the per-row min distance,
        # masking rows past the true batch (padded lanes hold 1e30 -> ignored).
        min_d = jnp.min(dist, axis=1, keepdims=True)                   # (T,1)
        row = (jax.lax.broadcasted_iota(jnp.int32, (tile_b, 1), 0)
               + pl.program_id(0) * tile_b)
        partial = jnp.sum(jnp.where(row < batch, min_d, 0.0))
        loss_ref[...] = jnp.broadcast_to(partial, (1, 8, 128))

    return kernel


# -------------------------------- forward -----------------------------------

def rlp_forward(x, consts, tile_b=512, x_buffers=2):
    """Returns (probs (B, 2), matching_loss scalar).

    `consts` is the tuple produced by prepare_params().  Set x_buffers=3 if a
    trace shows the x-block DMA exposed (small HP / small per-step compute).
    """
    w0, b0, w1, b1, prtt, psq, w3d, b3d = consts
    B, H = x.shape
    HP = w0.shape[0]
    LP = prtt.shape[1]
    assert w0.shape[1] == 3 * HP and H <= HP
    mxu_dtype = w0.dtype

    tile_b = _choose_tile_b(B, tile_b)
    B_pad = _round_up(B, tile_b)
    num_tiles = B_pad // tile_b

    # Only materialize a padded copy of x when the shape actually requires it.
    x_in = x.astype(mxu_dtype) if x.dtype != mxu_dtype else x
    if B_pad != B or HP != H:
        x_in = jnp.pad(x_in, ((0, B_pad - B), (0, HP - H)))

    # ---- generation-aware VMEM budget (constants are single-buffered) ----
    const_bytes = sum(int(a.size) * jnp.dtype(a.dtype).itemsize for a in consts)
    x_block_bytes = tile_b * HP * jnp.dtype(mxu_dtype).itemsize
    out_block_bytes = tile_b * 8 * 4 + 8 * 128 * 4
    tmp_bytes = tile_b * (4 * HP + 2 * LP) * 4        # rough f32 temporaries
    cap = _vmem_capacity_bytes()

    n_buf = max(2, int(x_buffers))
    if const_bytes + n_buf * x_block_bytes + 2 * out_block_bytes + tmp_bytes \
            > cap - (24 << 20):
        n_buf = 2
    needed = (const_bytes + n_buf * x_block_bytes + 2 * out_block_bytes
              + tmp_bytes + (2 << 20))
    vmem_limit = int(min(max(needed, 32 << 20), max(cap - (16 << 20), 32 << 20)))
    # TODO(synk): when `needed` exceeds the cap (very large HP), switch to a
    # K-streaming reduction grid over HP instead of full weight residency.

    # ---- specs: x pipelined, constants whole-array VMEM-resident ----
    in_specs = [_x_block_spec(tile_b, HP, n_buf)]
    in_specs += [pl.BlockSpec(memory_space=pltpu.MemorySpace.VMEM)
                 for _ in range(8)]
    out_specs = (pl.BlockSpec((tile_b, 8), lambda i: (i, 0)),
                 pl.BlockSpec((1, 8, 128), lambda i: (i, 0, 0)))
    out_shape = (jax.ShapeDtypeStruct((B_pad, 8), jnp.float32),
                 jax.ShapeDtypeStruct((num_tiles, 8, 128), jnp.float32))

    probs_pad, loss_part = pl.pallas_call(
        _make_kernel(HP, tile_b, B),
        grid=(num_tiles,),
        in_specs=in_specs,
        out_specs=out_specs,
        out_shape=out_shape,
        compiler_params=pltpu.CompilerParams(
            dimension_semantics=("parallel",),
            vmem_limit_bytes=vmem_limit),
    )(x_in, w0, b0, w1, b1, prtt, psq, w3d, b3d)

    probs = probs_pad[:B, :2]
    loss = jnp.sum(loss_part[:, 0, 0]) / B
    return probs, loss


# ---------------- deterministic parameter construction (synthetic) ----------

def _linear_init(key, fan_in, fan_out):
    # mimics torch.nn.Linear default init: U(-1/sqrt(fan_in), 1/sqrt(fan_in))
    kw, kb = jax.random.split(key)
    bound = fan_in ** -0.5
    w = jax.random.uniform(kw, (fan_in, fan_out), jnp.float32, -bound, bound)
    b = jax.random.uniform(kb, (1, fan_out), jnp.float32, -bound, bound)
    return w, b


def init_params(key, hidden, prototype_num):
    p2 = 2 * prototype_num
    keys = jax.random.split(key, 8)
    params = {"gate_w": [], "gate_b": [], "nonlinear_w": [], "nonlinear_b": [],
              "linear_w": [], "linear_b": []}
    k_iter = iter(keys)
    for _ in range(NUM_HIGH_WAY):
        kg, kn, kl = jax.random.split(next(k_iter), 3)
        w, b = _linear_init(kg, hidden, hidden)
        params["gate_w"].append(w); params["gate_b"].append(b)
        w, b = _linear_init(kn, hidden, hidden)
        params["nonlinear_w"].append(w); params["nonlinear_b"].append(b)
        w, b = _linear_init(kl, hidden, hidden)
        params["linear_w"].append(w); params["linear_b"].append(b)
    w3, b3 = _linear_init(next(k_iter), p2, 2)
    params["out3_w"], params["out3_b"] = w3, b3
    # TODO(synk): prototype is produced by generate_prototype() from training
    # data / rule_dict; here it is synthesized deterministically with the same
    # (HIDDEN, 2*PROTOTYPE_NUM) shape semantics used by forward().
    params["prototype"] = 0.5 * jax.random.normal(
        next(k_iter), (hidden, p2), jnp.float32)
    return params


# ---------------- pure-JAX reference (literal PyTorch semantics) ------------

def rlp_reference(x, params):
    h = x
    for l in range(NUM_HIGH_WAY):
        g = jax.nn.sigmoid(h @ params["gate_w"][l] + params["gate_b"][l])
        n = jax.nn.relu(h @ params["nonlinear_w"][l] + params["nonlinear_b"][l])
        lin = h @ params["linear_w"][l] + params["linear_b"][l]
        h = g * n + (1.0 - g) * lin
    diff = h[:, :, None] - params["prototype"][None, :, :]
    dist = jnp.sum(diff ** 2, axis=1)
    logits = dist @ params["out3_w"] + params["out3_b"]
    probs = jax.nn.softmax(logits, axis=-1)
    loss = jnp.mean(jnp.min(dist, axis=1))
    return probs, loss


if __name__ == "__main__":
    BATCH, HIDDEN, PROTOTYPE_NUM = 24, 32, 4

    key = jax.random.PRNGKey(0)
    kx, kp = jax.random.split(key)
    params = init_params(kp, HIDDEN, PROTOTYPE_NUM)
    x = jax.random.normal(kx, (BATCH, HIDDEN), jnp.float32)

    # tile_b request of 8 exercises a 3-step batch grid at this demo size.
    fwd = jax.jit(functools.partial(rlp_forward, tile_b=8))
    ref_probs, ref_loss = rlp_reference(x, params)

    # 1) exactness path: f32 MXU operands vs. the literal reference.
    consts_f32 = prepare_params(params, mxu_dtype=jnp.float32)
    probs32, loss32 = fwd(x, consts_f32)
    jax.block_until_ready((probs32, loss32))
    assert probs32.shape == (BATCH, 2) and loss32.shape == ()
    assert jnp.allclose(probs32, ref_probs, atol=5e-3, rtol=1e-3)
    assert jnp.allclose(loss32, ref_loss, atol=5e-3, rtol=1e-3)

    # 2) default performance path: bf16 MXU operands, f32 accumulate/epilogue.
    consts_bf16 = prepare_params(params)  # bf16 by default
    probs_bf, loss_bf = fwd(x, consts_bf16)
    jax.block_until_ready((probs_bf, loss_bf))
    assert probs_bf.shape == (BATCH, 2) and loss_bf.shape == ()
    assert bool(jnp.all(jnp.isfinite(probs_bf))) and bool(jnp.isfinite(loss_bf))
    assert jnp.allclose(jnp.sum(probs_bf, axis=1), 1.0, atol=1e-3)
    assert jnp.allclose(probs_bf, ref_probs, atol=5e-2)
    assert jnp.allclose(loss_bf, ref_loss, atol=5e-2, rtol=5e-2)

    print("KERNEL_OK")
</pallas_src>

<mosaic_0001>
module attributes {stable_mosaic.version = 11 : i64} {
  func.func @kernel(%arg0: i32, %arg1: memref<8x128xf32, #tpu.memory_space<vmem>>, %arg2: memref<128x384xf32, #tpu.memory_space<vmem>>, %arg3: memref<1x384xf32, #tpu.memory_space<vmem>>, %arg4: memref<128x384xf32, #tpu.memory_space<vmem>>, %arg5: memref<1x384xf32, #tpu.memory_space<vmem>>, %arg6: memref<128x128xf32, #tpu.memory_space<vmem>>, %arg7: memref<1x128xf32, #tpu.memory_space<vmem>>, %arg8: memref<1x128xf32, #tpu.memory_space<vmem>>, %arg9: memref<1x1xf32, #tpu.memory_space<vmem>>, %arg10: memref<8x8xf32, #tpu.memory_space<vmem>>, %arg11: memref<1x8x128xf32, #tpu.memory_space<vmem>>) attributes {dimension_semantics = [#tpu.dimension_semantics<parallel>], iteration_bounds = array<i64: 3>, scalar_prefetch = 0 : i64, scratch_operands = 0 : i64, tpu.core_type = #tpu.core_type<tc>, window_params = [{transform_indices = @transform_0, window_bounds = array<i64: 8, 128>}, {pipeline_mode = #tpu.pipeline_mode<synchronous>, transform_indices = @transform_1, window_bounds = array<i64: 128, 384>}, {pipeline_mode = #tpu.pipeline_mode<synchronous>, transform_indices = @transform_2, window_bounds = array<i64: 1, 384>}, {pipeline_mode = #tpu.pipeline_mode<synchronous>, transform_indices = @transform_3, window_bounds = array<i64: 128, 384>}, {pipeline_mode = #tpu.pipeline_mode<synchronous>, transform_indices = @transform_4, window_bounds = array<i64: 1, 384>}, {pipeline_mode = #tpu.pipeline_mode<synchronous>, transform_indices = @transform_5, window_bounds = array<i64: 128, 128>}, {pipeline_mode = #tpu.pipeline_mode<synchronous>, transform_indices = @transform_6, window_bounds = array<i64: 1, 128>}, {pipeline_mode = #tpu.pipeline_mode<synchronous>, transform_indices = @transform_7, window_bounds = array<i64: 1, 128>}, {pipeline_mode = #tpu.pipeline_mode<synchronous>, transform_indices = @transform_8, window_bounds = array<i64: 1, 1>}, {transform_indices = @transform_9, window_bounds = array<i64: 8, 8>}, {transform_indices = @transform_10, window_bounds = array<i64: 1, 8, 128>}]} {
    %c0 = arith.constant 0 : index
    %c0_0 = arith.constant 0 : index
    %0 = vector.load %arg1[%c0, %c0_0] : memref<8x128xf32, #tpu.memory_space<vmem>>, vector<8x128xf32>
    %c0_1 = arith.constant 0 : index
    %c0_2 = arith.constant 0 : index
    %1 = vector.load %arg2[%c0_1, %c0_2] : memref<128x384xf32, #tpu.memory_space<vmem>>, vector<128x384xf32>
    %cst = arith.constant dense<0.000000e+00> : vector<8x384xf32>
    %2 = tpu.matmul %0, %1, %cst {dimension_numbers = #tpu.dot_dimension_numbers<[1], [0], [0], [1], [0, 0, 1, 1], [], []>} : vector<8x128xf32>, vector<128x384xf32>, vector<8x384xf32> -> vector<8x384xf32>
    %c0_3 = arith.constant 0 : index
    %c0_4 = arith.constant 0 : index
    %3 = vector.load %arg3[%c0_3, %c0_4] : memref<1x384xf32, #tpu.memory_space<vmem>>, vector<1x384xf32>
    %4 = vector.broadcast %3 : vector<1x384xf32> to vector<8x384xf32>
    %5 = arith.addf %2, %4 : vector<8x384xf32>
    %6 = vector.extract_strided_slice %5 {offsets = [0, 0], sizes = [8, 128], strides = [1, 1]} : vector<8x384xf32> to vector<8x128xf32>
    %7 = arith.negf %6 : vector<8x128xf32>
    %8 = math.exp %7 : vector<8x128xf32>
    %cst_5 = arith.constant 1.000000e+00 : f32
    %9 = vector.broadcast %cst_5 : f32 to vector<8x128xf32>
    %10 = arith.addf %9, %8 : vector<8x128xf32>
    %11 = arith.divf %9, %10 : vector<8x128xf32>
    %12 = vector.extract_strided_slice %5 {offsets = [0, 128], sizes = [8, 128], strides = [1, 1]} : vector<8x384xf32> to vector<8x128xf32>
    %cst_6 = arith.constant 0.000000e+00 : f32
    %13 = vector.broadcast %cst_6 : f32 to vector<8x128xf32>
    %14 = arith.maximumf %12, %13 : vector<8x128xf32>
    %15 = vector.extract_strided_slice %5 {offsets = [0, 256], sizes = [8, 128], strides = [1, 1]} : vector<8x384xf32> to vector<8x128xf32>
    %16 = arith.subf %14, %15 : vector<8x128xf32>
    %17 = arith.mulf %11, %16 : vector<8x128xf32>
    %18 = arith.addf %15, %17 : vector<8x128xf32>
    %c0_7 = arith.constant 0 : index
    %c0_8 = arith.constant 0 : index
    %19 = vector.load %arg4[%c0_7, %c0_8] : memref<128x384xf32, #tpu.memory_space<vmem>>, vector<128x384xf32>
    %cst_9 = arith.constant dense<0.000000e+00> : vector<8x384xf32>
    %20 = tpu.matmul %18, %19, %cst_9 {dimension_numbers = #tpu.dot_dimension_numbers<[1], [0], [0], [1], [0, 0, 1, 1], [], []>} : vector<8x128xf32>, vector<128x384xf32>, vector<8x384xf32> -> vector<8x384xf32>
    %c0_10 = arith.constant 0 : index
    %c0_11 = arith.constant 0 : index
    %21 = vector.load %arg5[%c0_10, %c0_11] : memref<1x384xf32, #tpu.memory_space<vmem>>, vector<1x384xf32>
    %22 = vector.broadcast %21 : vector<1x384xf32> to vector<8x384xf32>
    %23 = arith.addf %20, %22 : vector<8x384xf32>
    %24 = vector.extract_strided_slice %23 {offsets = [0, 0], sizes = [8, 128], strides = [1, 1]} : vector<8x384xf32> to vector<8x128xf32>
    %25 = arith.negf %24 : vector<8x128xf32>
    %26 = math.exp %25 : vector<8x128xf32>
    %cst_12 = arith.constant 1.000000e+00 : f32
    %27 = vector.broadcast %cst_12 : f32 to vector<8x128xf32>
    %28 = arith.addf %27, %26 : vector<8x128xf32>
    %29 = arith.divf %27, %28 : vector<8x128xf32>
    %30 = vector.extract_strided_slice %23 {offsets = [0, 128], sizes = [8, 128], strides = [1, 1]} : vector<8x384xf32> to vector<8x128xf32>
    %cst_13 = arith.constant 0.000000e+00 : f32
    %31 = vector.broadcast %cst_13 : f32 to vector<8x128xf32>
    %32 = arith.maximumf %30, %31 : vector<8x128xf32>
    %33 = vector.extract_strided_slice %23 {offsets = [0, 256], sizes = [8, 128], strides = [1, 1]} : vector<8x384xf32> to vector<8x128xf32>
    %34 = arith.subf %32, %33 : vector<8x128xf32>
    %35 = arith.mulf %29, %34 : vector<8x128xf32>
    %36 = arith.addf %33, %35 : vector<8x128xf32>
    %37 = arith.mulf %36, %36 : vector<8x128xf32>
    %cst_14 = arith.constant dense<0.000000e+00> : vector<8xf32>
    %38 = vector.multi_reduction <add>, %37, %cst_14 [1] : vector<8x128xf32> to vector<8xf32>
    %39 = vector.shape_cast %38 : vector<8xf32> to vector<8x1xf32>
    %c0_15 = arith.constant 0 : index
    %c0_16 = arith.constant 0 : index
    %40 = vector.load %arg6[%c0_15, %c0_16] : memref<128x128xf32, #tpu.memory_space<vmem>>, vector<128x128xf32>
    %cst_17 = arith.constant dense<0.000000e+00> : vector<8x128xf32>
    %41 = tpu.matmul %36, %40, %cst_17 {dimension_numbers = #tpu.dot_dimension_numbers<[1], [0], [0], [1], [0, 0, 1, 1], [], []>} : vector<8x128xf32>, vector<128x128xf32>, vector<8x128xf32> -> vector<8x128xf32>
    %cst_18 = arith.constant 2.000000e+00 : f32
    %42 = vector.broadcast %cst_18 : f32 to vector<8x128xf32>
    %43 = arith.mulf %42, %41 : vector<8x128xf32>
    %44 = vector.broadcast %39 : vector<8x1xf32> to vector<8x128xf32>
    %45 = arith.subf %44, %43 : vector<8x128xf32>
    %c0_19 = arith.constant 0 : index
    %c0_20 = arith.constant 0 : index
    %46 = vector.load %arg7[%c0_19, %c0_20] : memref<1x128xf32, #tpu.memory_space<vmem>>, vector<1x128xf32>
    %47 = vector.broadcast %46 : vector<1x128xf32> to vector<8x128xf32>
    %48 = arith.addf %45, %47 : vector<8x128xf32>
    %cst_21 = arith.constant 0.000000e+00 : f32
    %49 = vector.broadcast %cst_21 : f32 to vector<8x128xf32>
    %50 = arith.maximumf %48, %49 : vector<8x128xf32>
    %c0_22 = arith.constant 0 : index
    %c0_23 = arith.constant 0 : index
    %51 = vector.load %arg8[%c0_22, %c0_23] : memref<1x128xf32, #tpu.memory_space<vmem>>, vector<1x128xf32>
    %52 = vector.broadcast %51 : vector<1x128xf32> to vector<8x128xf32>
    %53 = arith.mulf %50, %52 : vector<8x128xf32>
    %cst_24 = arith.constant dense<0.000000e+00> : vector<8xf32>
    %54 = vector.multi_reduction <add>, %53, %cst_24 [1] : vector<8x128xf32> to vector<8xf32>
    %55 = vector.shape_cast %54 : vector<8xf32> to vector<8x1xf32>
    %c0_25 = arith.constant 0 : index
    %c0_26 = arith.constant 0 : index
    %56 = vector.load %arg9[%c0_25, %c0_26] : memref<1x1xf32, #tpu.memory_space<vmem>>, vector<1x1xf32>
    %57 = vector.broadcast %56 : vector<1x1xf32> to vector<8x1xf32>
    %58 = arith.addf %55, %57 : vector<8x1xf32>
    %59 = arith.negf %58 : vector<8x1xf32>
    %60 = math.exp %59 : vector<8x1xf32>
    %cst_27 = arith.constant 1.000000e+00 : f32
    %61 = vector.broadcast %cst_27 : f32 to vector<8x1xf32>
    %62 = arith.addf %61, %60 : vector<8x1xf32>
    %63 = arith.divf %61, %62 : vector<8x1xf32>
    %cst_28 = arith.constant 1.000000e+00 : f32
    %64 = vector.broadcast %cst_28 : f32 to vector<8x1xf32>
    %65 = arith.subf %64, %63 : vector<8x1xf32>
    %66 = tpu.iota {dimensions = array<i32: 1>} : vector<8x8xi32>
    %c0_i32 = arith.constant 0 : i32
    %67 = vector.broadcast %c0_i32 : i32 to vector<8x8xi32>
    %68 = arith.cmpi eq, %66, %67 : vector<8x8xi32>
    %c1_i32 = arith.constant 1 : i32
    %69 = vector.broadcast %c1_i32 : i32 to vector<8x8xi32>
    %70 = arith.cmpi eq, %66, %69 : vector<8x8xi32>
    %cst_29 = arith.constant 0.000000e+00 : f32
    %71 = vector.shape_cast %65 : vector<8x1xf32> to vector<8x1xf32>
    %72 = vector.broadcast %71 : vector<8x1xf32> to vector<8x8xf32>
    %73 = vector.broadcast %cst_29 : f32 to vector<8x8xf32>
    %74 = arith.select %70, %72, %73 : vector<8x8xi1>, vector<8x8xf32>
    %75 = vector.shape_cast %63 : vector<8x1xf32> to vector<8x1xf32>
    %76 = vector.broadcast %75 : vector<8x1xf32> to vector<8x8xf32>
    %77 = arith.select %68, %76, %74 : vector<8x8xi1>, vector<8x8xf32>
    %c0_30 = arith.constant 0 : index
    %c0_31 = arith.constant 0 : index
    %78 = vector.load %arg10[%c0_30, %c0_31] : memref<8x8xf32, #tpu.memory_space<vmem>>, vector<8x8xf32>
    tpu.vector_store %arg10[%c0_30, %c0_31], %77 {strides = array<i32>} : memref<8x8xf32, #tpu.memory_space<vmem>>, vector<8x8xf32>,
    %cst_32 = arith.constant dense<0x7F800000> : vector<8xf32>
    %79 = vector.multi_reduction <minimumf>, %50, %cst_32 [1] : vector<8x128xf32> to vector<8xf32>
    %80 = vector.shape_cast %79 : vector<8xf32> to vector<8x1xf32>
    %81 = tpu.iota {dimensions = array<i32: 0>} : vector<8x1xi32>
    %c8_i32 = arith.constant 8 : i32
    %82 = arith.muli %arg0, %c8_i32 : i32
    %83 = vector.broadcast %82 : i32 to vector<8x1xi32>
    %84 = arith.addi %81, %83 : vector<8x1xi32>
    %c24_i32 = arith.constant 24 : i32
    %85 = vector.broadcast %c24_i32 : i32 to vector<8x1xi32>
    %86 = arith.cmpi slt, %84, %85 : vector<8x1xi32>
    %cst_33 = arith.constant 0.000000e+00 : f32
    %87 = vector.broadcast %cst_33 : f32 to vector<8x1xf32>
    %88 = arith.select %86, %80, %87 : vector<8x1xi1>, vector<8x1xf32>
    %89 = vector.shape_cast %88 : vector<8x1xf32> to vector<1x8x1xf32>
    %cst_34 = arith.constant dense<0.000000e+00> : vector<1xf32>
    %90 = vector.multi_reduction <add>, %89, %cst_34 [1, 2] : vector<1x8x1xf32> to vector<1xf32>
    %91 = vector.shape_cast %90 : vector<1xf32> to vector<1x1x1xf32>
    %92 = vector.extract %91[0, 0, 0] : f32 from vector<1x1x1xf32>
    %93 = vector.broadcast %92 : f32 to vector<1x8x128xf32>
    %c0_35 = arith.constant 0 : index
    %c0_36 = arith.constant 0 : index
    %c0_37 = arith.constant 0 : index
    %94 = vector.load %arg11[%c0_35, %c0_36, %c0_37] : memref<1x8x128xf32, #tpu.memory_space<vmem>>, vector<1x8x128xf32>
    tpu.vector_store %arg11[%c0_35, %c0_36, %c0_37], %93 {strides = array<i32>} : memref<1x8x128xf32, #tpu.memory_space<vmem>>, vector<1x8x128xf32>,
    return
  }
  func.func @transform_0(%arg0: i32) -> (i32, i32) {
    %c0_i32 = arith.constant 0 : i32
    %c0_i32_0 = arith.constant 0 : i32
    return %arg0, %c0_i32 : i32, i32
  }
  func.func @transform_1(%arg0: i32) -> (i32, i32) {
    %c0_i32 = arith.constant 0 : i32
    %c0_i32_0 = arith.constant 0 : i32
    %c0_i32_1 = arith.constant 0 : i32
    return %c0_i32, %c0_i32_0 : i32, i32
  }
  func.func @transform_2(%arg0: i32) -> (i32, i32) {
    %c0_i32 = arith.constant 0 : i32
    %c0_i32_0 = arith.constant 0 : i32
    %c0_i32_1 = arith.constant 0 : i32
    return %c0_i32, %c0_i32_0 : i32, i32
  }
  func.func @transform_3(%arg0: i32) -> (i32, i32) {
    %c0_i32 = arith.constant 0 : i32
    %c0_i32_0 = arith.constant 0 : i32
    %c0_i32_1 = arith.constant 0 : i32
    return %c0_i32, %c0_i32_0 : i32, i32
  }
  func.func @transform_4(%arg0: i32) -> (i32, i32) {
    %c0_i32 = arith.constant 0 : i32
    %c0_i32_0 = arith.constant 0 : i32
    %c0_i32_1 = arith.constant 0 : i32
    return %c0_i32, %c0_i32_0 : i32, i32
  }
  func.func @transform_5(%arg0: i32) -> (i32, i32) {
    %c0_i32 = arith.constant 0 : i32
    %c0_i32_0 = arith.constant 0 : i32
    %c0_i32_1 = arith.constant 0 : i32
    return %c0_i32, %c0_i32_0 : i32, i32
  }
  func.func @transform_6(%arg0: i32) -> (i32, i32) {
    %c0_i32 = arith.constant 0 : i32
    %c0_i32_0 = arith.constant 0 : i32
    %c0_i32_1 = arith.constant 0 : i32
    return %c0_i32, %c0_i32_0 : i32, i32
  }
  func.func @transform_7(%arg0: i32) -> (i32, i32) {
    %c0_i32 = arith.constant 0 : i32
    %c0_i32_0 = arith.constant 0 : i32
    %c0_i32_1 = arith.constant 0 : i32
    return %c0_i32, %c0_i32_0 : i32, i32
  }
  func.func @transform_8(%arg0: i32) -> (i32, i32) {
    %c0_i32 = arith.constant 0 : i32
    %c0_i32_0 = arith.constant 0 : i32
    %c0_i32_1 = arith.constant 0 : i32
    return %c0_i32, %c0_i32_0 : i32, i32
  }
  func.func @transform_9(%arg0: i32) -> (i32, i32) {
    %c0_i32 = arith.constant 0 : i32
    %c0_i32_0 = arith.constant 0 : i32
    return %arg0, %c0_i32 : i32, i32
  }
  func.func @transform_10(%arg0: i32) -> (i32, i32, i32) {
    %c0_i32 = arith.constant 0 : i32
    %c0_i32_0 = arith.constant 0 : i32
    %c0_i32_1 = arith.constant 0 : i32
    return %arg0, %c0_i32, %c0_i32_0 : i32, i32, i32
  }
}

</mosaic_0001>

<llo_original>
// kernel: rlp_forward.1
$region0: #{rlp_forward.1}
  #allocation0 [shape = 'u32[]', space=smem, size = 0x4, offset = 0x4, fixed_abs, tag = 'smem constant byte address 0x4 - core index']
  #allocation1 [shape = 'u32[144,128]{1,0:T(1,128)}', space=vmem, size = 0x12000, scoped, tag = 'internal scratch']
  #allocation2 [shape = 'f32[1,1]{1,0:T(1,128)S(1)}', space=vmem, size = 0x200, scoped, tag = 'scoped memory for rlp_forward.1']
  %s0 = inlined_call_operand.vmem [shape: f32[24,128], index: 0, kind: input, shape index: {}]
  %s1 = inlined_call_operand.hbm [shape: f32[128,384], index: 1, kind: input, shape index: {}]
  %s2 = inlined_call_operand.vmem [shape: f32[1,384], index: 2, kind: input, shape index: {}]
  %s3 = inlined_call_operand.hbm [shape: f32[128,384], index: 3, kind: input, shape index: {}]
  %s4 = inlined_call_operand.vmem [shape: f32[1,384], index: 4, kind: input, shape index: {}]
  %s5 = inlined_call_operand.hbm [shape: f32[128,128], index: 5, kind: input, shape index: {}]
  %s6 = inlined_call_operand.vmem [shape: f32[1,128], index: 6, kind: input, shape index: {}]
  %s7 = inlined_call_operand.vmem [shape: f32[1,128], index: 7, kind: input, shape index: {}]
  %s8 = inlined_call_operand.<no memory space> [shape: f32[1,1], index: 8, kind: input, shape index: {}]
  %s9 = inlined_call_operand.vmem [shape: f32[24,8], index: 9, kind: output, shape index: {0}]
  %s10 = inlined_call_operand.vmem [shape: f32[3,8,128], index: 10, kind: output, shape index: {1}]
  %11 = xla_tuple %s9, %s10
  %s12 = sld [smem:[#allocation0]]
  $region89: #{rlp_forward.1} parent=0
    _
  %s14 = ssub.s32 1, %s12
  %s15 = scalar_select 0, %s14, %s12
  %v16 = vstv %s8
  %17 = vst [vmem:[#allocation2] sm:$0x1] %v16
  $region1: #{rlp_forward.1} parent=0
    #allocation3 [shape = 'u8[196608]{0}', space=vmem, size = 0x30000, scoped, tag = 'input window, operand 1, single buffered']
    #allocation4 [shape = 's32[2]{0}', space=sflag, size = 0x8, scoped, tag = 'scoped memory for rlp_forward.1']
    #allocation5 [shape = 'u8[196608]{0}', space=vmem, size = 0x30000, scoped, tag = 'input window, operand 3, single buffered']
    #allocation6 [shape = 's32[1]{0}', space=sflag, size = 0x4, scoped, tag = 'scoped memory for rlp_forward.1']
    #allocation7 [shape = 'u8[65536]{0}', space=vmem, size = 0x10000, scoped, tag = 'input window, operand 5, single buffered']
    %18 = vsyncpa [#allocation4], 0
    %19 = vsyncpa [#allocation6], 0
    loop: start=0, step=1, limit=5
    $region2: #{rlp_forward.1} parent=1 // loop_pre_header
      _
    $region3: #{rlp_forward.1} parent=1 // loop_header
      %s21 = sphi 0, %s25
      %p22 = scmp.ge.s32.totalorder %s21, 5
      %s31 = sphi 0, %s33
      %s34 = sphi 0, %s31
      %s35 = sphi 0, %s34
      %s51 = sphi 0, %s35
      %s55 = sphi 0, %s55
      %s57 = sphi 0, %s55
      %s58 = sphi 0, %s57
      %s72 = sphi 0, %s58
      %s76 = sphi 0, %s76
      %s78 = sphi 0, %s76
      %s79 = sphi 0, %s78
      %s93 = sphi 0, %s79
      %s97 = sphi 0, %s97
      %s99 = sphi 0, %s97
      %s100 = sphi 0, %s99
      %s114 = sphi 0, %s100
      %s118 = sphi 0, %s118
      %s120 = sphi 0, %s118
      %s121 = sphi 0, %s120
      %s135 = sphi 0, %s121
      %s139 = sphi 0, %s139
      %s141 = sphi 0, %s139
      %s142 = sphi 0, %s141
      %s156 = sphi 0, %s142
      %s160 = sphi 0, %s160
      %s162 = sphi 0, %s160
      %s163 = sphi 0, %s162
      %s177 = sphi 0, %s163
      %s181 = sphi 0, %s181
      %s183 = sphi 0, %s181
      %s184 = sphi 0, %s183
      %s198 = sphi 0, %s184
      %s202 = sphi 0, %s202
      %s204 = sphi 0, %s202
      %s205 = sphi 0, %s204
      %s219 = sphi 0, %s205
      %s225 = sphi 0, %s227
      %s228 = sphi 0, %s225
      %s229 = sphi 0, %s228
      %s245 = sphi 0, %s229
      %s251 = sphi 0, %s253
      %s254 = sphi 0, %s251
      %s255 = sphi 0, %s254
      %s271 = sphi 0, %s255
    $region4: #{rlp_forward.1} parent=1 // loop_header_branch
      %24 = sbr.rel (%p22) target = $region8
    $region5: #{rlp_forward.1} parent=1 // loop_body
      %s26 = ssub.s32 %s21, 1
      %s27 = ssub.s32 %s21, 2
      %s28 = sadd.s32 %s21, 1
      %s29 = ssub.s32 %s21, %s28
      %p30 = scmp.eq.s32.totalorder %s29, 0
      %s32 = sadd.s32 %s31, 1
      %s33 = scalar_select %p30, %s31, %s32
      %p36 = pneg %p30
      %p37 = scmp.eq.s32.totalorder %s21, 2
      %p38 = por %p36, %p37
      %p39 = scmp.ne.s32.totalorder %s31, %s34
      %p40 = scmp.eq.s32.totalorder %s21, 0
      %p41 = por %p39, %p40
      %p42 = scmp.ne.s32.totalorder %s31, %s34
      %p43 = scmp.eq.s32.totalorder %s26, 2
      %p44 = por %p42, %p43
      %p45 = scmp.ne.s32.totalorder %s34, %s35
      %p46 = scmp.eq.s32.totalorder %s26, 0
      %p47 = por %p45, %p46
      %p48 = scmp.ne.s32.totalorder %s34, %s35
      %p49 = scmp.eq.s32.totalorder %s27, 2
      %p50 = por %p48, %p49
      %p52 = scmp.ne.s32.totalorder %s35, %s51
      %p53 = scmp.eq.s32.totalorder %s27, 0
      %p54 = por %p52, %p53
      %s56 = sadd.s32 %s55, 1
      %p59 = scmp.eq.s32.totalorder %s21, 2
      %p60 = scmp.ne.s32.totalorder %s55, %s57
      %p61 = scmp.eq.s32.totalorder %s21, 0
      %p62 = por %p60, %p61
      %p63 = scmp.ne.s32.totalorder %s55, %s57
      %p64 = scmp.eq.s32.totalorder %s26, 2
      %p65 = por %p63, %p64
      %p66 = scmp.ne.s32.totalorder %s57, %s58
      %p67 = scmp.eq.s32.totalorder %s26, 0
      %p68 = por %p66, %p67
      %p69 = scmp.ne.s32.totalorder %s57, %s58
      %p70 = scmp.eq.s32.totalorder %s27, 2
      %p71 = por %p69, %p70
      %p73 = scmp.ne.s32.totalorder %s58, %s72
      %p74 = scmp.eq.s32.totalorder %s27, 0
      %p75 = por %p73, %p74
      %s77 = sadd.s32 %s76, 1
      %p80 = scmp.eq.s32.totalorder %s21, 2
      %p81 = scmp.ne.s32.totalorder %s76, %s78
      %p82 = scmp.eq.s32.totalorder %s21, 0
      %p83 = por %p81, %p82
      %p84 = scmp.ne.s32.totalorder %s76, %s78
      %p85 = scmp.eq.s32.totalorder %s26, 2
      %p86 = por %p84, %p85
      %p87 = scmp.ne.s32.totalorder %s78, %s79
      %p88 = scmp.eq.s32.totalorder %s26, 0
      %p89 = por %p87, %p88
      %p90 = scmp.ne.s32.totalorder %s78, %s79
      %p91 = scmp.eq.s32.totalorder %s27, 2
      %p92 = por %p90, %p91
      %p94 = scmp.ne.s32.totalorder %s79, %s93
      %p95 = scmp.eq.s32.totalorder %s27, 0
      %p96 = por %p94, %p95
      %s98 = sadd.s32 %s97, 1
      %p101 = scmp.eq.s32.totalorder %s21, 2
      %p102 = scmp.ne.s32.totalorder %s97, %s99
      %p103 = scmp.eq.s32.totalorder %s21, 0
      %p104 = por %p102, %p103
      %p105 = scmp.ne.s32.totalorder %s97, %s99
      %p106 = scmp.eq.s32.totalorder %s26, 2
      %p107 = por %p105, %p106
      %p108 = scmp.ne.s32.totalorder %s99, %s100
      %p109 = scmp.eq.s32.totalorder %s26, 0
      %p110 = por %p108, %p109
      %p111 = scmp.ne.s32.totalorder %s99, %s100
      %p112 = scmp.eq.s32.totalorder %s27, 2
      %p113 = por %p111, %p112
      %p115 = scmp.ne.s32.totalorder %s100, %s114
      %p116 = scmp.eq.s32.totalorder %s27, 0
      %p117 = por %p115, %p116
      %s119 = sadd.s32 %s118, 1
      %p122 = scmp.eq.s32.totalorder %s21, 2
      %p123 = scmp.ne.s32.totalorder %s118, %s120
      %p124 = scmp.eq.s32.totalorder %s21, 0
      %p125 = por %p123, %p124
      %p126 = scmp.ne.s32.totalorder %s118, %s120
      %p127 = scmp.eq.s32.totalorder %s26, 2
      %p128 = por %p126, %p127
      %p129 = scmp.ne.s32.totalorder %s120, %s121
      %p130 = scmp.eq.s32.totalorder %s26, 0
      %p131 = por %p129, %p130
      %p132 = scmp.ne.s32.totalorder %s120, %s121
      %p133 = scmp.eq.s32.totalorder %s27, 2
      %p134 = por %p132, %p133
      %p136 = scmp.ne.s32.totalorder %s121, %s135
      %p137 = scmp.eq.s32.totalorder %s27, 0
      %p138 = por %p136, %p137
      %s140 = sadd.s32 %s139, 1
      %p143 = scmp.eq.s32.totalorder %s21, 2
      %p144 = scmp.ne.s32.totalorder %s139, %s141
      %p145 = scmp.eq.s32.totalorder %s21, 0
      %p146 = por %p144, %p145
      %p147 = scmp.ne.s32.totalorder %s139, %s141
      %p148 = scmp.eq.s32.totalorder %s26, 2
      %p149 = por %p147, %p148
      %p150 = scmp.ne.s32.totalorder %s141, %s142
      %p151 = scmp.eq.s32.totalorder %s26, 0
      %p152 = por %p150, %p151
      %p153 = scmp.ne.s32.totalorder %s141, %s142
      %p154 = scmp.eq.s32.totalorder %s27, 2
      %p155 = por %p153, %p154
      %p157 = scmp.ne.s32.totalorder %s142, %s156
      %p158 = scmp.eq.s32.totalorder %s27, 0
      %p159 = por %p157, %p158
      %s161 = sadd.s32 %s160, 1
      %p164 = scmp.eq.s32.totalorder %s21, 2
      %p165 = scmp.ne.s32.totalorder %s160, %s162
      %p166 = scmp.eq.s32.totalorder %s21, 0
      %p167 = por %p165, %p166
      %p168 = scmp.ne.s32.totalorder %s160, %s162
      %p169 = scmp.eq.s32.totalorder %s26, 2
      %p170 = por %p168, %p169
      %p171 = scmp.ne.s32.totalorder %s162, %s163
      %p172 = scmp.eq.s32.totalorder %s26, 0
      %p173 = por %p171, %p172
      %p174 = scmp.ne.s32.totalorder %s162, %s163
      %p175 = scmp.eq.s32.totalorder %s27, 2
      %p176 = por %p174, %p175
      %p178 = scmp.ne.s32.totalorder %s163, %s177
      %p179 = scmp.eq.s32.totalorder %s27, 0
      %p180 = por %p178, %p179
      %s182 = sadd.s32 %s181, 1
      %p185 = scmp.eq.s32.totalorder %s21, 2
      %p186 = scmp.ne.s32.totalorder %s181, %s183
      %p187 = scmp.eq.s32.totalorder %s21, 0
      %p188 = por %p186, %p187
      %p189 = scmp.ne.s32.totalorder %s181, %s183
      %p190 = scmp.eq.s32.totalorder %s26, 2
      %p191 = por %p189, %p190
      %p192 = scmp.ne.s32.totalorder %s183, %s184
      %p193 = scmp.eq.s32.totalorder %s26, 0
      %p194 = por %p192, %p193
      %p195 = scmp.ne.s32.totalorder %s183, %s184
      %p196 = scmp.eq.s32.totalorder %s27, 2
      %p197 = por %p195, %p196
      %p199 = scmp.ne.s32.totalorder %s184, %s198
      %p200 = scmp.eq.s32.totalorder %s27, 0
      %p201 = por %p199, %p200
      %s203 = sadd.s32 %s202, 1
      %p206 = scmp.eq.s32.totalorder %s21, 2
      %p207 = scmp.ne.s32.totalorder %s202, %s204
      %p208 = scmp.eq.s32.totalorder %s21, 0
      %p209 = por %p207, %p208
      %p210 = scmp.ne.s32.totalorder %s202, %s204
      %p211 = scmp.eq.s32.totalorder %s26, 2
      %p212 = por %p210, %p211
      %p213 = scmp.ne.s32.totalorder %s204, %s205
      %p214 = scmp.eq.s32.totalorder %s26, 0
      %p215 = por %p213, %p214
      %p216 = scmp.ne.s32.totalorder %s204, %s205
      %p217 = scmp.eq.s32.totalorder %s27, 2
      %p218 = por %p216, %p217
      %p220 = scmp.ne.s32.totalorder %s205, %s219
      %p221 = scmp.eq.s32.totalorder %s27, 0
      %p222 = por %p220, %p221
      %s223 = ssub.s32 %s21, %s28
      %p224 = scmp.eq.s32.totalorder %s223, 0
      %s226 = sadd.s32 %s225, 1
      %s227 = scalar_select %p224, %s225, %s226
      %p230 = pneg %p224
      %p231 = scmp.eq.s32.totalorder %s21, 2
      %p232 = por %p230, %p231
      %p233 = scmp.ne.s32.totalorder %s225, %s228
      %p234 = scmp.eq.s32.totalorder %s21, 0
      %p235 = por %p233, %p234
      %p236 = scmp.ne.s32.totalorder %s225, %s228
      %p237 = scmp.eq.s32.totalorder %s26, 2
      %p238 = por %p236, %p237
      %p239 = scmp.ne.s32.totalorder %s228, %s229
      %p240 = scmp.eq.s32.totalorder %s26, 0
      %p241 = por %p239, %p240
      %p242 = scmp.ne.s32.totalorder %s228, %s229
      %p243 = scmp.eq.s32.totalorder %s27, 2
      %p244 = por %p242, %p243
      %p246 = scmp.ne.s32.totalorder %s229, %s245
      %p247 = scmp.eq.s32.totalorder %s27, 0
      %p248 = por %p246, %p247
      %s249 = ssub.s32 %s21, %s28
      %p250 = scmp.eq.s32.totalorder %s249, 0
      %s252 = sadd.s32 %s251, 1
      %s253 = scalar_select %p250, %s251, %s252
      %p256 = pneg %p250
      %p257 = scmp.eq.s32.totalorder %s21, 2
      %p258 = por %p256, %p257
      %p259 = scmp.ne.s32.totalorder %s251, %s254
      %p260 = scmp.eq.s32.totalorder %s21, 0
      %p261 = por %p259, %p260
      %p262 = scmp.ne.s32.totalorder %s251, %s254
      %p263 = scmp.eq.s32.totalorder %s26, 2
      %p264 = por %p262, %p263
      %p265 = scmp.ne.s32.totalorder %s254, %s255
      %p266 = scmp.eq.s32.totalorder %s26, 0
      %p267 = por %p265, %p266
      %p268 = scmp.ne.s32.totalorder %s254, %s255
      %p269 = scmp.eq.s32.totalorder %s27, 2
      %p270 = por %p268, %p269
      %p272 = scmp.ne.s32.totalorder %s255, %s271
      %p273 = scmp.eq.s32.totalorder %s27, 0
      %p274 = por %p272, %p273
      %p275 = scmp.le.s32.totalorder 1, %s21
      %p276 = scmp.lt.s32.totalorder %s21, 4
      %p277 = pnand %p275, %p276
      %p278 = pneg %p277
      // Predicated region
      $region9: #{rlp_forward.1} parent=5 // pred_check
        _
      $region10: #{rlp_forward.1} parent=5 // pred_check_branch
        %280 = sbr.rel (%p277) target = $region12
      $region11: #{rlp_forward.1} parent=5 // pred_region
        %s281 = ssub.s32 %s21, 1
        // Predicated region
        $region13: #{rlp_forward.1} parent=11 // pred_check
          %p282 = pneg %p68
        $region14: #{rlp_forward.1} parent=11 // pred_check_branch
          %284 = sbr.rel (%p282) target = $region16
        $region15: #{rlp_forward.1} parent=11 // pred_region
          %s286 = ssub.s32 6144, 6144
          %287 = vsyncadd [#allocation4], %s286
          %s288 = sshll.u32 [#allocation3], 4
          %s289 = int_to_ptr.vmem [resolvable:$true] %s288
          %294 = dma.hbm_to_vmem [thread:$0]  %s1, 6144, %s289, [#allocation4], 384, 384, 24
        $region16: #{rlp_forward.1} parent=11 // pred_fallthru
          _
        // Predicated region
        $region17: #{rlp_forward.1} parent=11 // pred_check
          %p295 = pneg %p89
        $region18: #{rlp_forward.1} parent=11 // pred_check_branch
          %297 = sbr.rel (%p295) target = $region20
        $region19: #{rlp_forward.1} parent=11 // pred_region
          _
        $region20: #{rlp_forward.1} parent=11 // pred_fallthru
          _
        // Predicated region
        $region21: #{rlp_forward.1} parent=11 // pred_check
          %p298 = pneg %p110
        $region22: #{rlp_forward.1} parent=11 // pred_check_branch
          %300 = sbr.rel (%p298) target = $region24
        $region23: #{rlp_forward.1} parent=11 // pred_region
          %s302 = ssub.s32 6144, 6144
          %303 = vsyncadd [#allocation6], %s302
          %s304 = sshll.u32 [#allocation5], 4
          %s305 = int_to_ptr.vmem [resolvable:$true] %s304
          %310 = dma.hbm_to_vmem [thread:$0]  %s3, 6144, %s305, [#allocation6], 384, 384, 24
        $region24: #{rlp_forward.1} parent=11 // pred_fallthru
          _
        // Predicated region
        $region25: #{rlp_forward.1} parent=11 // pred_check
          %p311 = pneg %p131
        $region26: #{rlp_forward.1} parent=11 // pred_check_branch
          %313 = sbr.rel (%p311) target = $region28
        $region27: #{rlp_forward.1} parent=11 // pred_region
          _
        $region28: #{rlp_forward.1} parent=11 // pred_fallthru
          _
        // Predicated region
        $region29: #{rlp_forward.1} parent=11 // pred_check
          %p314 = pneg %p152
        $region30: #{rlp_forward.1} parent=11 // pred_check_branch
          %316 = sbr.rel (%p314) target = $region32
        $region31: #{rlp_forward.1} parent=11 // pred_region
          %s318 = ssub.s32 2048, 2048
          %319 = vsyncadd [#allocation6], %s318
          %s320 = sshll.u32 [#allocation7], 4
          %s321 = int_to_ptr.vmem [resolvable:$true] %s320
          %326 = dma.hbm_to_vmem [thread:$0]  %s5, 2048, %s321, [#allocation6], 128, 128, 8
        $region32: #{rlp_forward.1} parent=11 // pred_fallthru
          _
        // Predicated region
        $region33: #{rlp_forward.1} parent=11 // pred_check
          %p327 = pneg %p173
        $region34: #{rlp_forward.1} parent=11 // pred_check_branch
          %329 = sbr.rel (%p327) target = $region36
        $region35: #{rlp_forward.1} parent=11 // pred_region
          _
        $region36: #{rlp_forward.1} parent=11 // pred_fallthru
          _
        // Predicated region
        $region37: #{rlp_forward.1} parent=11 // pred_check
          %p330 = pneg %p194
        $region38: #{rlp_forward.1} parent=11 // pred_check_branch
          %332 = sbr.rel (%p330) target = $region40
        $region39: #{rlp_forward.1} parent=11 // pred_region
          _
        $region40: #{rlp_forward.1} parent=11 // pred_fallthru
          _
        // Predicated region
        $region41: #{rlp_forward.1} parent=11 // pred_check
          %p333 = pneg %p215
        $region42: #{rlp_forward.1} parent=11 // pred_check_branch
          %335 = sbr.rel (%p333) target = $region44
        $region43: #{rlp_forward.1} parent=11 // pred_region
          _
        $region44: #{rlp_forward.1} parent=11 // pred_fallthru
          _
      $region12: #{rlp_forward.1} parent=5 // pred_fallthru
        _
      %p336 = scmp.lt.s32.totalorder %s21, 3
      // Predicated region
      $region45: #{rlp_forward.1} parent=5 // pred_check
        %p337 = pneg %p336
      $region46: #{rlp_forward.1} parent=5 // pred_check_branch
        %339 = sbr.rel (%p337) target = $region48
      $region47: #{rlp_forward.1} parent=5 // pred_region
        // Predicated region
        $region49: #{rlp_forward.1} parent=47 // pred_check
          %p340 = pneg %p41
        $region50: #{rlp_forward.1} parent=47 // pred_check_branch
          %342 = sbr.rel (%p340) target = $region52
        $region51: #{rlp_forward.1} parent=47 // pred_region
          %p343 = scmp.lt.s32.totalorder %s21, 2
          %s344 = scalar_select %p343, %s21, 2
          %s345 = smul.addr %s344, 8
          %s346 = scalar_lea.vmem %s0, %s345
        $region52: #{rlp_forward.1} parent=47 // pred_fallthru
          _
      $region48: #{rlp_forward.1} parent=5 // pred_fallthru
        _
      %p347 = scmp.le.s32.totalorder 1, %s21
      %p348 = scmp.lt.s32.totalorder %s21, 4
      %p349 = pnand %p347, %p348
      %p350 = pneg %p349
      // Predicated region
      $region53: #{rlp_forward.1} parent=5 // pred_check
        _
      $region54: #{rlp_forward.1} parent=5 // pred_check_branch
        %352 = sbr.rel (%p349) target = $region56
      $region55: #{rlp_forward.1} parent=5 // pred_region
        %s353 = ssub.s32 %s21, 1
        // Predicated region
        $region57: #{rlp_forward.1} parent=55 // pred_check
          %p354 = pneg %p68
        $region58: #{rlp_forward.1} parent=55 // pred_check_branch
          %356 = sbr.rel (%p354) target = $region60
        $region59: #{rlp_forward.1} parent=55 // pred_region
          %357 = dma.done [#allocation4], 6144
        $region60: #{rlp_forward.1} parent=55 // pred_fallthru
          _
        // Predicated region
        $region61: #{rlp_forward.1} parent=55 // pred_check
          %p358 = pneg %p110
        $region62: #{rlp_forward.1} parent=55 // pred_check_branch
          %360 = sbr.rel (%p358) target = $region64
        $region63: #{rlp_forward.1} parent=55 // pred_region
          %361 = dma.done [#allocation6], 6144
        $region64: #{rlp_forward.1} parent=55 // pred_fallthru
          _
        // Predicated region
        $region65: #{rlp_forward.1} parent=55 // pred_check
          %p362 = pneg %p152
        $region66: #{rlp_forward.1} parent=55 // pred_check_branch
          %364 = sbr.rel (%p362) target = $region68
        $region67: #{rlp_forward.1} parent=55 // pred_region
          %365 = dma.done [#allocation6], 2048
        $region68: #{rlp_forward.1} parent=55 // pred_fallthru
          _
        %p366 = scmp.lt.s32.totalorder %s26, 2
        %s367 = scalar_select %p366, %s26, 2
        %s368 = smul.addr %s367, 8
        %s369 = scalar_lea.vmem %s0, %s368
        %p370 = pneg %p47
        %p371 = pneg %p44
        %p372 = pneg %p68
        %p373 = pneg %p65
        %p374 = pneg %p89
        %p375 = pneg %p86
        %p376 = pneg %p110
        %p377 = pneg %p107
        %p378 = pneg %p131
        %p379 = pneg %p128
        %p380 = pneg %p152
        %p381 = pneg %p149
        %p382 = pneg %p173
        %p383 = pneg %p170
        %p384 = pneg %p194
        %p385 = pneg %p191
        %p386 = pneg %p215
        %p387 = pneg %p212
        %p388 = pneg %p241
        %p389 = pneg %p238
        %p390 = scmp.lt.s32.totalorder %s26, 2
        %s391 = scalar_select %p390, %s26, 2
        %s392 = smul.addr %s391, 8
        %s393 = scalar_lea.vmem %s9, %s392
        %p394 = pneg %p267
        %p395 = pneg %p264
        %p396 = scmp.lt.s32.totalorder %s26, 2
        %s397 = scalar_select %p396, %s26, 2
        %s398 = smul.addr %s397, 8
        %s399 = scalar_lea.vmem %s10, %s398
        %p400 = scmp.lt.s32.totalorder %s26, 2
        %s401 = scalar_select %p400, %s26, 2
        %s402 = smul.addr %s401, 8
        %s403 = scalar_lea.vmem %s0, %s402
        %p404 = scmp.lt.s32.totalorder %s26, 2
        %s405 = scalar_select %p404, %s26, 2
        %s406 = smul.addr %s405, 8
        %s407 = scalar_lea.vmem %s9, %s406
        %p408 = scmp.lt.s32.totalorder %s26, 2
        %s409 = scalar_select %p408, %s26, 2
        %s410 = smul.addr %s409, 8
        %s411 = scalar_lea.vmem %s10, %s410
        %v412 = vld [vmem:[%s403] sm:$0xff]
        %v413 = vld [vmem:[#allocation3] sm:$0xff]
        %v414 = vld [vmem:[#allocation3 + $0x8] sm:$0xff]
        %v415 = vld [vmem:[#allocation3 + $0x10] sm:$0xff]
        %v416 = vld [vmem:[#allocation3 + $0x18] sm:$0xff]
        %v417 = vld [vmem:[#allocation3 + $0x20] sm:$0xff]
        %v418 = vld [vmem:[#allocation3 + $0x28] sm:$0xff]
        %v419 = vld [vmem:[#allocation3 + $0x30] sm:$0xff]
        %v420 = vld [vmem:[#allocation3 + $0x38] sm:$0xff]
        %v421 = vld [vmem:[#allocation3 + $0x40] sm:$0xff]
        %v422 = vld [vmem:[#allocation3 + $0x48] sm:$0xff]
        %v423 = vld [vmem:[#allocation3 + $0x50] sm:$0xff]
        %v424 = vld [vmem:[#allocation3 + $0x58] sm:$0xff]
        %v425 = vld [vmem:[#allocation3 + $0x60] sm:$0xff]
        %v426 = vld [vmem:[#allocation3 + $0x68] sm:$0xff]
        %v427 = vld [vmem:[#allocation3 + $0x70] sm:$0xff]
        %v428 = vld [vmem:[#allocation3 + $0x78] sm:$0xff]
        %v429 = vld [vmem:[#allocation3 + $0x80] sm:$0xff]
        %v430 = vld [vmem:[#allocation3 + $0x88] sm:$0xff]
        %v431 = vld [vmem:[#allocation3 + $0x90] sm:$0xff]
        %v432 = vld [vmem:[#allocation3 + $0x98] sm:$0xff]
        %v433 = vld [vmem:[#allocation3 + $0xa0] sm:$0xff]
        %v434 = vld [vmem:[#allocation3 + $0xa8] sm:$0xff]
        %v435 = vld [vmem:[#allocation3 + $0xb0] sm:$0xff]
        %v436 = vld [vmem:[#allocation3 + $0xb8] sm:$0xff]
        %v437 = vld [vmem:[#allocation3 + $0xc0] sm:$0xff]
        %v438 = vld [vmem:[#allocation3 + $0xc8] sm:$0xff]
        %v439 = vld [vmem:[#allocation3 + $0xd0] sm:$0xff]
        %v440 = vld [vmem:[#allocation3 + $0xd8] sm:$0xff]
        %v441 = vld [vmem:[#allocation3 + $0xe0] sm:$0xff]
        %v442 = vld [vmem:[#allocation3 + $0xe8] sm:$0xff]
        %v443 = vld [vmem:[#allocation3 + $0xf0] sm:$0xff]
        %v444 = vld [vmem:[#allocation3 + $0xf8] sm:$0xff]
        %v445 = vld [vmem:[#allocation3 + $0x100] sm:$0xff]
        %v446 = vld [vmem:[#allocation3 + $0x108] sm:$0xff]
        %v447 = vld [vmem:[#allocation3 + $0x110] sm:$0xff]
        %v448 = vld [vmem:[#allocation3 + $0x118] sm:$0xff]
        %v449 = vld [vmem:[#allocation3 + $0x120] sm:$0xff]
        %v450 = vld [vmem:[#allocation3 + $0x128] sm:$0xff]
        %v451 = vld [vmem:[#allocation3 + $0x130] sm:$0xff]
        %v452 = vld [vmem:[#allocation3 + $0x138] sm:$0xff]
        %v453 = vld [vmem:[#allocation3 + $0x140] sm:$0xff]
        %v454 = vld [vmem:[#allocation3 + $0x148] sm:$0xff]
        %v455 = vld [vmem:[#allocation3 + $0x150] sm:$0xff]
        %v456 = vld [vmem:[#allocation3 + $0x158] sm:$0xff]
        %v457 = vld [vmem:[#allocation3 + $0x160] sm:$0xff]
        %v458 = vld [vmem:[#allocation3 + $0x168] sm:$0xff]
        %v459 = vld [vmem:[#allocation3 + $0x170] sm:$0xff]
        %v460 = vld [vmem:[#allocation3 + $0x178] sm:$0xff]
        %v461 = vld [vmem:[%s2] sm:$0x7]
        %v463 = vlaneseq
        %v464 = vshrl.u32 %v463, 7
        %v465 = vsub.s32 0, %v464
        %v466 = vrot.slane %v461, %v465
        %v467 = vlaneseq
        %v468 = vshrl.u32 %v467, 7
        %v469 = vsub.s32 1, %v468
        %v470 = vrot.slane %v461, %v469
        %v471 = vlaneseq
        %v472 = vshrl.u32 %v471, 7
        %v473 = vsub.s32 2, %v472
        %v474 = vrot.slane %v461, %v473
        %478 = vmatprep.subr.mxu0 %v414
        %479 = vmatpush1.msra.mxu0 %v413
        %480 = vmatprep.subr.mxu0 %v417
        %481 = vmatpush1.msra.mxu0 %v416
        %482 = vmatprep.subr.mxu0 %v420
        %483 = vmatpush1.msra.mxu0 %v419
        %484 = vmatprep.subr.mxu0 %v423
        %485 = vmatpush1.msra.mxu0 %v422
        %486 = vmatprep.subr.mxu0 %v426
        %487 = vmatpush1.msra.mxu0 %v425
        %488 = vmatprep.subr.mxu0 %v429
        %489 = vmatpush1.msra.mxu0 %v428
        %490 = vmatprep.subr.mxu0 %v432
        %491 = vmatpush1.msra.mxu0 %v431
        %492 = vmatprep.subr.mxu0 %v435
        %493 = vmatpush1.msra.mxu0 %v434
        %494 = vmatprep.subr.mxu0 %v438
        %495 = vmatpush1.msra.mxu0 %v437
        %496 = vmatprep.subr.mxu0 %v441
        %497 = vmatpush1.msra.mxu0 %v440
        %498 = vmatprep.subr.mxu0 %v444
        %499 = vmatpush1.msra.mxu0 %v443
        %500 = vmatprep.subr.mxu0 %v447
        %501 = vmatpush1.msra.mxu0 %v446
        %502 = vmatprep.subr.mxu0 %v450
        %503 = vmatpush1.msra.mxu0 %v449
        %504 = vmatprep.subr.mxu0 %v453
        %505 = vmatpush1.msra.mxu0 %v452
        %506 = vmatprep.subr.mxu0 %v456
        %507 = vmatpush1.msra.mxu0 %v455
        %508 = vmatprep.subr.mxu0 %v459
        %509 = vmatpush1.msra.mxu0 %v458
        %510 = vmatprep.subr.mxu0 0.0
        %511 = vmatpush1.msra.mxu0 0.0
        %512 = vmatprep.subr.mxu0 0.0
        %513 = vmatpush1.msra.mxu0 0.0
        %514 = vmatprep.subr.mxu0 0.0
        %515 = vmatpush1.msra.mxu0 0.0
        %516 = vmatprep.subr.mxu0 0.0
        %517 = vmatpush1.msra.mxu0 0.0
        %518 = vmatprep.subr.mxu0 0.0
        %519 = vmatpush1.msra.mxu0 0.0
        %520 = vmatprep.subr.mxu0 0.0
        %521 = vmatpush1.msra.mxu0 0.0
        %522 = vmatprep.subr.mxu0 0.0
        %523 = vmatpush1.msra.mxu0 0.0
        %524 = vmatprep.subr.mxu0 0.0
        %525 = vmatpush1.msra.mxu0 0.0
        %526 = vmatprep.subr.mxu0 0.0
        %527 = vmatpush1.msra.mxu0 0.0
        %528 = vmatprep.subr.mxu0 0.0
        %529 = vmatpush1.msra.mxu0 0.0
        %530 = vmatprep.subr.mxu0 0.0
        %531 = vmatpush1.msra.mxu0 0.0
        %532 = vmatprep.subr.mxu0 0.0
        %533 = vmatpush1.msra.mxu0 0.0
        %534 = vmatprep.subr.mxu0 0.0
        %535 = vmatpush1.msra.mxu0 0.0
        %536 = vmatprep.subr.mxu0 0.0
        %537 = vmatpush1.msra.mxu0 0.0
        %538 = vmatprep.subr.mxu0 0.0
        %539 = vmatpush1.msra.mxu0 0.0
        %540 = vmatprep.subr.mxu0 0.0
        %541 = vmatpush1.msra.mxu0 0.0
        %542 = vmatprep.mubr.f32.mxu0 0.0
        %543 = vmatmul.mubr.f32.gmra.mrb[0].mxu0 %v412
        %v544 = vpop.f32.mrb[0].mxu0
        %v545 = vadd.f32 %v466, %v544
        %v546 = vpop.f32.mrb[0].mxu0
        %v547 = vadd.f32 %v470, %v546
        %548 = vdwg.mxu0
        %549 = vmatprep.subr.mxu0 0.0
        %550 = vmatpush1.msra.mxu0 %v415
        %551 = vmatprep.subr.mxu0 0.0
        %552 = vmatpush1.msra.mxu0 %v418
        %553 = vmatprep.subr.mxu0 0.0
        %554 = vmatpush1.msra.mxu0 %v421
        %555 = vmatprep.subr.mxu0 0.0
        %556 = vmatpush1.msra.mxu0 %v424
        %557 = vmatprep.subr.mxu0 0.0
        %558 = vmatpush1.msra.mxu0 %v427
        %559 = vmatprep.subr.mxu0 0.0
        %560 = vmatpush1.msra.mxu0 %v430
        %561 = vmatprep.subr.mxu0 0.0
        %562 = vmatpush1.msra.mxu0 %v433
        %563 = vmatprep.subr.mxu0 0.0
        %564 = vmatpush1.msra.mxu0 %v436
        %565 = vmatprep.subr.mxu0 0.0
        %566 = vmatpush1.msra.mxu0 %v439
        %567 = vmatprep.subr.mxu0 0.0
        %568 = vmatpush1.msra.mxu0 %v442
        %569 = vmatprep.subr.mxu0 0.0
        %570 = vmatpush1.msra.mxu0 %v445
        %571 = vmatprep.subr.mxu0 0.0
        %572 = vmatpush1.msra.mxu0 %v448
        %573 = vmatprep.subr.mxu0 0.0
        %574 = vmatpush1.msra.mxu0 %v451
        %575 = vmatprep.subr.mxu0 0.0
        %576 = vmatpush1.msra.mxu0 %v454
        %577 = vmatprep.subr.mxu0 0.0
        %578 = vmatpush1.msra.mxu0 %v457
        %579 = vmatprep.subr.mxu0 0.0
        %580 = vmatpush1.msra.mxu0 %v460
        %581 = vmatprep.subr.mxu0 0.0
        %582 = vmatpush1.msra.mxu0 0.0
        %583 = vmatprep.subr.mxu0 0.0
        %584 = vmatpush1.msra.mxu0 0.0
        %585 = vmatprep.subr.mxu0 0.0
        %586 = vmatpush1.msra.mxu0 0.0
        %587 = vmatprep.subr.mxu0 0.0
        %588 = vmatpush1.msra.mxu0 0.0
        %589 = vmatprep.subr.mxu0 0.0
        %590 = vmatpush1.msra.mxu0 0.0
        %591 = vmatprep.subr.mxu0 0.0
        %592 = vmatpush1.msra.mxu0 0.0
        %593 = vmatprep.subr.mxu0 0.0
        %594 = vmatpush1.msra.mxu0 0.0
        %595 = vmatprep.subr.mxu0 0.0
        %596 = vmatpush1.msra.mxu0 0.0
        %597 = vmatprep.subr.mxu0 0.0
        %598 = vmatpush1.msra.mxu0 0.0
        %599 = vmatprep.subr.mxu0 0.0
        %600 = vmatpush1.msra.mxu0 0.0
        %601 = vmatprep.subr.mxu0 0.0
        %602 = vmatpush1.msra.mxu0 0.0
        %603 = vmatprep.subr.mxu0 0.0
        %604 = vmatpush1.msra.mxu0 0.0
        %605 = vmatprep.subr.mxu0 0.0
        %606 = vmatpush1.msra.mxu0 0.0
        %607 = vmatprep.subr.mxu0 0.0
        %608 = vmatpush1.msra.mxu0 0.0
        %609 = vmatprep.subr.mxu0 0.0
        %610 = vmatpush1.msra.mxu0 0.0
        %611 = vmatprep.subr.mxu0 0.0
        %612 = vmatpush1.msra.mxu0 0.0
        %613 = vmatprep.mubr.f32.mxu0 0.0
        %614 = vmatmul.mubr.f32.gmra.mrb[0].mxu0 %v412
        %v615 = vpop.f32.mrb[0].mxu0
        %v616 = vadd.f32 %v474, %v615
        %v617 = vpop.f32.mrb[0].mxu0
        %618 = vdwg.mxu0
        %v619 = vxor.u32 %v545, 2147483648
        %v620 = vmul.f32 %v619, 1.442695
        %v621 = vpow.pop %v620
        %v622 = vadd.f32 %v621, 1.0
        %v623 = vrcp.pop %v622
        %v624 = vmul.f32 1.0, %v623
        %v625 = vmax.f32 %v547, 0.0
        %v626 = vsub.f32 %v625, %v616
        %v627 = vmul.f32 %v624, %v626
        %v628 = vadd.f32 %v616, %v627
        %v629 = vld [vmem:[#allocation5] sm:$0xff]
        %v630 = vld [vmem:[#allocation5 + $0x8] sm:$0xff]
        %v631 = vld [vmem:[#allocation5 + $0x10] sm:$0xff]
        %v632 = vld [vmem:[#allocation5 + $0x18] sm:$0xff]
        %v633 = vld [vmem:[#allocation5 + $0x20] sm:$0xff]
        %v634 = vld [vmem:[#allocation5 + $0x28] sm:$0xff]
        %v635 = vld [vmem:[#allocation5 + $0x30] sm:$0xff]
        %v636 = vld [vmem:[#allocation5 + $0x38] sm:$0xff]
        %v637 = vld [vmem:[#allocation5 + $0x40] sm:$0xff]
        %v638 = vld [vmem:[#allocation5 + $0x48] sm:$0xff]
        %v639 = vld [vmem:[#allocation5 + $0x50] sm:$0xff]
        %v640 = vld [vmem:[#allocation5 + $0x58] sm:$0xff]
        %v641 = vld [vmem:[#allocation5 + $0x60] sm:$0xff]
        %v642 = vld [vmem:[#allocation5 + $0x68] sm:$0xff]
        %v643 = vld [vmem:[#allocation5 + $0x70] sm:$0xff]
        %v644 = vld [vmem:[#allocation5 + $0x78] sm:$0xff]
        %v645 = vld [vmem:[#allocation5 + $0x80] sm:$0xff]
        %v646 = vld [vmem:[#allocation5 + $0x88] sm:$0xff]
        %v647 = vld [vmem:[#allocation5 + $0x90] sm:$0xff]
        %v648 = vld [vmem:[#allocation5 + $0x98] sm:$0xff]
        %v649 = vld [vmem:[#allocation5 + $0xa0] sm:$0xff]
        %v650 = vld [vmem:[#allocation5 + $0xa8] sm:$0xff]
        %v651 = vld [vmem:[#allocation5 + $0xb0] sm:$0xff]
        %v652 = vld [vmem:[#allocation5 + $0xb8] sm:$0xff]
        %v653 = vld [vmem:[#allocation5 + $0xc0] sm:$0xff]
        %v654 = vld [vmem:[#allocation5 + $0xc8] sm:$0xff]
        %v655 = vld [vmem:[#allocation5 + $0xd0] sm:$0xff]
        %v656 = vld [vmem:[#allocation5 + $0xd8] sm:$0xff]
        %v657 = vld [vmem:[#allocation5 + $0xe0] sm:$0xff]
        %v658 = vld [vmem:[#allocation5 + $0xe8] sm:$0xff]
        %v659 = vld [vmem:[#allocation5 + $0xf0] sm:$0xff]
        %v660 = vld [vmem:[#allocation5 + $0xf8] sm:$0xff]
        %v661 = vld [vmem:[#allocation5 + $0x100] sm:$0xff]
        %v662 = vld [vmem:[#allocation5 + $0x108] sm:$0xff]
        %v663 = vld [vmem:[#allocation5 + $0x110] sm:$0xff]
        %v664 = vld [vmem:[#allocation5 + $0x118] sm:$0xff]
        %v665 = vld [vmem:[#allocation5 + $0x120] sm:$0xff]
        %v666 = vld [vmem:[#allocation5 + $0x128] sm:$0xff]
        %v667 = vld [vmem:[#allocation5 + $0x130] sm:$0xff]
        %v668 = vld [vmem:[#allocation5 + $0x138] sm:$0xff]
        %v669 = vld [vmem:[#allocation5 + $0x140] sm:$0xff]
        %v670 = vld [vmem:[#allocation5 + $0x148] sm:$0xff]
        %v671 = vld [vmem:[#allocation5 + $0x150] sm:$0xff]
        %v672 = vld [vmem:[#allocation5 + $0x158] sm:$0xff]
        %v673 = vld [vmem:[#allocation5 + $0x160] sm:$0xff]
        %v674 = vld [vmem:[#allocation5 + $0x168] sm:$0xff]
        %v675 = vld [vmem:[#allocation5 + $0x170] sm:$0xff]
        %v676 = vld [vmem:[#allocation5 + $0x178] sm:$0xff]
        %v677 = vld [vmem:[%s4] sm:$0x7]
        %v679 = vlaneseq
        %v680 = vshrl.u32 %v679, 7
        %v681 = vsub.s32 0, %v680
        %v682 = vrot.slane %v677, %v681
        %v683 = vlaneseq
        %v684 = vshrl.u32 %v683, 7
        %v685 = vsub.s32 1, %v684
        %v686 = vrot.slane %v677, %v685
        %v687 = vlaneseq
        %v688 = vshrl.u32 %v687, 7
        %v689 = vsub.s32 2, %v688
        %v690 = vrot.slane %v677, %v689
        %694 = vmatprep.subr.mxu0 %v630
        %695 = vmatpush1.msra.mxu0 %v629
        %696 = vmatprep.subr.mxu0 %v633
        %697 = vmatpush1.msra.mxu0 %v632
        %698 = vmatprep.subr.mxu0 %v636
        %699 = vmatpush1.msra.mxu0 %v635
        %700 = vmatprep.subr.mxu0 %v639
        %701 = vmatpush1.msra.mxu0 %v638
        %702 = vmatprep.subr.mxu0 %v642
        %703 = vmatpush1.msra.mxu0 %v641
        %704 = vmatprep.subr.mxu0 %v645
        %705 = vmatpush1.msra.mxu0 %v644
        %706 = vmatprep.subr.mxu0 %v648
        %707 = vmatpush1.msra.mxu0 %v647
        %708 = vmatprep.subr.mxu0 %v651
        %709 = vmatpush1.msra.mxu0 %v650
        %710 = vmatprep.subr.mxu0 %v654
        %711 = vmatpush1.msra.mxu0 %v653
        %712 = vmatprep.subr.mxu0 %v657
        %713 = vmatpush1.msra.mxu0 %v656
        %714 = vmatprep.subr.mxu0 %v660
        %715 = vmatpush1.msra.mxu0 %v659
        %716 = vmatprep.subr.mxu0 %v663
        %717 = vmatpush1.msra.mxu0 %v662
        %718 = vmatprep.subr.mxu0 %v666
        %719 = vmatpush1.msra.mxu0 %v665
        %720 = vmatprep.subr.mxu0 %v669
        %721 = vmatpush1.msra.mxu0 %v668
        %722 = vmatprep.subr.mxu0 %v672
        %723 = vmatpush1.msra.mxu0 %v671
        %724 = vmatprep.subr.mxu0 %v675
        %725 = vmatpush1.msra.mxu0 %v674
        %726 = vmatprep.subr.mxu0 0.0
        %727 = vmatpush1.msra.mxu0 0.0
        %728 = vmatprep.subr.mxu0 0.0
        %729 = vmatpush1.msra.mxu0 0.0
        %730 = vmatprep.subr.mxu0 0.0
        %731 = vmatpush1.msra.mxu0 0.0
        %732 = vmatprep.subr.mxu0 0.0
        %733 = vmatpush1.msra.mxu0 0.0
        %734 = vmatprep.subr.mxu0 0.0
        %735 = vmatpush1.msra.mxu0 0.0
        %736 = vmatprep.subr.mxu0 0.0
        %737 = vmatpush1.msra.mxu0 0.0
        %738 = vmatprep.subr.mxu0 0.0
        %739 = vmatpush1.msra.mxu0 0.0
        %740 = vmatprep.subr.mxu0 0.0
        %741 = vmatpush1.msra.mxu0 0.0
        %742 = vmatprep.subr.mxu0 0.0
        %743 = vmatpush1.msra.mxu0 0.0
        %744 = vmatprep.subr.mxu0 0.0
        %745 = vmatpush1.msra.mxu0 0.0
        %746 = vmatprep.subr.mxu0 0.0
        %747 = vmatpush1.msra.mxu0 0.0
        %748 = vmatprep.subr.mxu0 0.0
        %749 = vmatpush1.msra.mxu0 0.0
        %750 = vmatprep.subr.mxu0 0.0
        %751 = vmatpush1.msra.mxu0 0.0
        %752 = vmatprep.subr.mxu0 0.0
        %753 = vmatpush1.msra.mxu0 0.0
        %754 = vmatprep.subr.mxu0 0.0
        %755 = vmatpush1.msra.mxu0 0.0
        %756 = vmatprep.subr.mxu0 0.0
        %757 = vmatpush1.msra.mxu0 0.0
        %758 = vmatprep.mubr.f32.mxu0 0.0
        %759 = vmatmul.mubr.f32.gmra.mrb[0].mxu0 %v628
        %v760 = vpop.f32.mrb[0].mxu0
        %v761 = vadd.f32 %v682, %v760
        %v762 = vpop.f32.mrb[0].mxu0
        %v763 = vadd.f32 %v686, %v762
        %764 = vdwg.mxu0
        %765 = vmatprep.subr.mxu0 0.0
        %766 = vmatpush1.msra.mxu0 %v631
        %767 = vmatprep.subr.mxu0 0.0
        %768 = vmatpush1.msra.mxu0 %v634
        %769 = vmatprep.subr.mxu0 0.0
        %770 = vmatpush1.msra.mxu0 %v637
        %771 = vmatprep.subr.mxu0 0.0
        %772 = vmatpush1.msra.mxu0 %v640
        %773 = vmatprep.subr.mxu0 0.0
        %774 = vmatpush1.msra.mxu0 %v643
        %775 = vmatprep.subr.mxu0 0.0
        %776 = vmatpush1.msra.mxu0 %v646
        %777 = vmatprep.subr.mxu0 0.0
        %778 = vmatpush1.msra.mxu0 %v649
        %779 = vmatprep.subr.mxu0 0.0
        %780 = vmatpush1.msra.mxu0 %v652
        %781 = vmatprep.subr.mxu0 0.0
        %782 = vmatpush1.msra.mxu0 %v655
        %783 = vmatprep.subr.mxu0 0.0
        %784 = vmatpush1.msra.mxu0 %v658
        %785 = vmatprep.subr.mxu0 0.0
        %786 = vmatpush1.msra.mxu0 %v661
        %787 = vmatprep.subr.mxu0 0.0
        %788 = vmatpush1.msra.mxu0 %v664
        %789 = vmatprep.subr.mxu0 0.0
        %790 = vmatpush1.msra.mxu0 %v667
        %791 = vmatprep.subr.mxu0 0.0
        %792 = vmatpush1.msra.mxu0 %v670
        %793 = vmatprep.subr.mxu0 0.0
        %794 = vmatpush1.msra.mxu0 %v673
        %795 = vmatprep.subr.mxu0 0.0
        %796 = vmatpush1.msra.mxu0 %v676
        %797 = vmatprep.subr.mxu0 0.0
        %798 = vmatpush1.msra.mxu0 0.0
        %799 = vmatprep.subr.mxu0 0.0
        %800 = vmatpush1.msra.mxu0 0.0
        %801 = vmatprep.subr.mxu0 0.0
        %802 = vmatpush1.msra.mxu0 0.0
        %803 = vmatprep.subr.mxu0 0.0
        %804 = vmatpush1.msra.mxu0 0.0
        %805 = vmatprep.subr.mxu0 0.0
        %806 = vmatpush1.msra.mxu0 0.0
        %807 = vmatprep.subr.mxu0 0.0
        %808 = vmatpush1.msra.mxu0 0.0
        %809 = vmatprep.subr.mxu0 0.0
        %810 = vmatpush1.msra.mxu0 0.0
        %811 = vmatprep.subr.mxu0 0.0
        %812 = vmatpush1.msra.mxu0 0.0
        %813 = vmatprep.subr.mxu0 0.0
        %814 = vmatpush1.msra.mxu0 0.0
        %815 = vmatprep.subr.mxu0 0.0
        %816 = vmatpush1.msra.mxu0 0.0
        %817 = vmatprep.subr.mxu0 0.0
        %818 = vmatpush1.msra.mxu0 0.0
        %819 = vmatprep.subr.mxu0 0.0
        %820 = vmatpush1.msra.mxu0 0.0
        %821 = vmatprep.subr.mxu0 0.0
        %822 = vmatpush1.msra.mxu0 0.0
        %823 = vmatprep.subr.mxu0 0.0
        %824 = vmatpush1.msra.mxu0 0.0
        %825 = vmatprep.subr.mxu0 0.0
        %826 = vmatpush1.msra.mxu0 0.0
        %827 = vmatprep.subr.mxu0 0.0
        %828 = vmatpush1.msra.mxu0 0.0
        %829 = vmatprep.mubr.f32.mxu0 0.0
        %830 = vmatmul.mubr.f32.gmra.mrb[0].mxu0 %v628
        %v831 = vpop.f32.mrb[0].mxu0
        %v832 = vadd.f32 %v690, %v831
        %v833 = vpop.f32.mrb[0].mxu0
        %834 = vdwg.mxu0
        %v835 = vxor.u32 %v761, 2147483648
        %v836 = vmul.f32 %v835, 1.442695
        %v837 = vpow.pop %v836
        %v838 = vadd.f32 %v837, 1.0
        %v839 = vrcp.pop %v838
        %v840 = vmul.f32 1.0, %v839
        %v841 = vmax.f32 %v763, 0.0
        %v842 = vsub.f32 %v841, %v832
        %v843 = vmul.f32 %v840, %v842
        %v844 = vadd.f32 %v832, %v843
        %v845 = vmul.f32 %v844, %v844
        %846 = vadd.xlane.f32.xlu0 %v845
        %v847 = vpop.xlane.xlu0 %846
        %v848 = vld [vmem:[#allocation7] sm:$0xff]
        %v849 = vld [vmem:[#allocation7 + $0x8] sm:$0xff]
        %v850 = vld [vmem:[#allocation7 + $0x10] sm:$0xff]
        %v851 = vld [vmem:[#allocation7 + $0x18] sm:$0xff]
        %v852 = vld [vmem:[#allocation7 + $0x20] sm:$0xff]
        %v853 = vld [vmem:[#allocation7 + $0x28] sm:$0xff]
        %v854 = vld [vmem:[#allocation7 + $0x30] sm:$0xff]
        %v855 = vld [vmem:[#allocation7 + $0x38] sm:$0xff]
        %v856 = vld [vmem:[#allocation7 + $0x40] sm:$0xff]
        %v857 = vld [vmem:[#allocation7 + $0x48] sm:$0xff]
        %v858 = vld [vmem:[#allocation7 + $0x50] sm:$0xff]
        %v859 = vld [vmem:[#allocation7 + $0x58] sm:$0xff]
        %v860 = vld [vmem:[#allocation7 + $0x60] sm:$0xff]
        %v861 = vld [vmem:[#allocation7 + $0x68] sm:$0xff]
        %v862 = vld [vmem:[#allocation7 + $0x70] sm:$0xff]
        %v863 = vld [vmem:[#allocation7 + $0x78] sm:$0xff]
        %864 = vmatprep.subr.mxu0 0.0
        %865 = vmatpush1.msra.mxu0 %v848
        %866 = vmatprep.subr.mxu0 0.0
        %867 = vmatpush1.msra.mxu0 %v849
        %868 = vmatprep.subr.mxu0 0.0
        %869 = vmatpush1.msra.mxu0 %v850
        %870 = vmatprep.subr.mxu0 0.0
        %871 = vmatpush1.msra.mxu0 %v851
        %872 = vmatprep.subr.mxu0 0.0
        %873 = vmatpush1.msra.mxu0 %v852
        %874 = vmatprep.subr.mxu0 0.0
        %875 = vmatpush1.msra.mxu0 %v853
        %876 = vmatprep.subr.mxu0 0.0
        %877 = vmatpush1.msra.mxu0 %v854
        %878 = vmatprep.subr.mxu0 0.0
        %879 = vmatpush1.msra.mxu0 %v855
        %880 = vmatprep.subr.mxu0 0.0
        %881 = vmatpush1.msra.mxu0 %v856
        %882 = vmatprep.subr.mxu0 0.0
        %883 = vmatpush1.msra.mxu0 %v857
        %884 = vmatprep.subr.mxu0 0.0
        %885 = vmatpush1.msra.mxu0 %v858
        %886 = vmatprep.subr.mxu0 0.0
        %887 = vmatpush1.msra.mxu0 %v859
        %888 = vmatprep.subr.mxu0 0.0
        %889 = vmatpush1.msra.mxu0 %v860
        %890 = vmatprep.subr.mxu0 0.0
        %891 = vmatpush1.msra.mxu0 %v861
        %892 = vmatprep.subr.mxu0 0.0
        %893 = vmatpush1.msra.mxu0 %v862
        %894 = vmatprep.subr.mxu0 0.0
        %895 = vmatpush1.msra.mxu0 %v863
        %896 = vmatprep.subr.mxu0 0.0
        %897 = vmatpush1.msra.mxu0 0.0
        %898 = vmatprep.subr.mxu0 0.0
        %899 = vmatpush1.msra.mxu0 0.0
        %900 = vmatprep.subr.mxu0 0.0
        %901 = vmatpush1.msra.mxu0 0.0
        %902 = vmatprep.subr.mxu0 0.0
        %903 = vmatpush1.msra.mxu0 0.0
        %904 = vmatprep.subr.mxu0 0.0
        %905 = vmatpush1.msra.mxu0 0.0
        %906 = vmatprep.subr.mxu0 0.0
        %907 = vmatpush1.msra.mxu0 0.0
        %908 = vmatprep.subr.mxu0 0.0
        %909 = vmatpush1.msra.mxu0 0.0
        %910 = vmatprep.subr.mxu0 0.0
        %911 = vmatpush1.msra.mxu0 0.0
        %912 = vmatprep.subr.mxu0 0.0
        %913 = vmatpush1.msra.mxu0 0.0
        %914 = vmatprep.subr.mxu0 0.0
        %915 = vmatpush1.msra.mxu0 0.0
        %916 = vmatprep.subr.mxu0 0.0
        %917 = vmatpush1.msra.mxu0 0.0
        %918 = vmatprep.subr.mxu0 0.0
        %919 = vmatpush1.msra.mxu0 0.0
        %920 = vmatprep.subr.mxu0 0.0
        %921 = vmatpush1.msra.mxu0 0.0
        %922 = vmatprep.subr.mxu0 0.0
        %923 = vmatpush1.msra.mxu0 0.0
        %924 = vmatprep.subr.mxu0 0.0
        %925 = vmatpush1.msra.mxu0 0.0
        %926 = vmatprep.subr.mxu0 0.0
        %927 = vmatpush1.msra.mxu0 0.0
        %928 = vmatprep.mubr.f32.mxu0 0.0
        %929 = vmatmul.mubr.f32.gmra.mrb[0].mxu0 %v844
        %v930 = vpop.f32.mrb[0].mxu0
        %v931 = vadd.f32 0.0, %v930
        %v932 = vpop.f32.mrb[0].mxu0
        %933 = vdwg.mxu0
        %v934 = vmul.f32 %v931, 2.0
        %v935 = vsub.f32 %v847, %v934
        %v936 = vld [vmem:[%s6] sm:$0x1]
        %v938 = vlaneseq
        %v939 = vshrl.u32 %v938, 7
        %v940 = vsub.s32 0, %v939
        %v941 = vrot.slane %v936, %v940
        %v943 = vadd.f32 %v935, %v941
        %v944 = vmax.f32 %v943, 0.0
        %v945 = vld [vmem:[%s7] sm:$0x1]
        %v947 = vlaneseq
        %v948 = vshrl.u32 %v947, 7
        %v949 = vsub.s32 0, %v948
        %v950 = vrot.slane %v945, %v949
        %v952 = vmul.f32 %v944, %v950
        %953 = vadd.xlane.f32.xlu0 %v952
        %v954 = vpop.xlane.xlu0 %953
        %v955 = vld [vmem:[#allocation2] sm:$0x1]
        %v957 = vlaneseq
        %v958 = vshrl.u32 %v957, 7
        %v959 = vsub.s32 0, %v958
        %v960 = vrot.slane %v955, %v959
        %v962 = vadd.f32 %v954, %v960
        %v963 = vxor.u32 %v962, 2147483648
        %v964 = vmul.f32 %v963, 1.442695
        %v965 = vpow.pop %v964
        %v966 = vadd.f32 %v965, 1.0
        %v967 = vrcp.pop %v966
        %v968 = vmul.f32 1.0, %v967
        %v969 = vsub.f32 1.0, %v968
        %v970 = vlaneseq
        %v971 = vand.u32 %v970, 127
        %vm972 = vcmp.eq.s32.totalorder %v971, 0
        %vm973 = vcmp.eq.s32.totalorder %v971, 1
        %975 = vset.pattern.permute.xlu0 0
        %976 = vperm.xlu0 %975, %v969
        %v977 = vpop.permute.xlu0 %976
        %v979 = vsel %vm973, %v977, 0.0
        %981 = vset.pattern.permute.xlu0 0
        %982 = vperm.xlu0 %981, %v968
        %v983 = vpop.permute.xlu0 %982
        %v985 = vsel %vm972, %v983, %v979
        %vm986 = vcmask 64512
        %987 = vst.msk [vmem:[%s407] sm:$0xff] %vm986, %v985
        %988 = vmin.xlane.f32.xlu0 %v944
        %v989 = vpop.xlane.xlu0 %988
        %v990 = vlaneseq
        %v991 = vshrl.u32 %v990, 7
        %s992 = smul.u32 %s26, 8
        %v993 = vstv %s992
        %v994 = vadd.s32 %v991, %v993
        %vm995 = vcmp.lt.s32.totalorder %v994, 24
        %v996 = vsel %vm995, %v989, 0.0
        %vm997 = vcmask 7168
        %v998 = vsel %vm997, %v996, 0.0
        %999 = vadd.xlane.f32.xlu0 %v998
        %v1000 = vpop.xlane.xlu0 %999
        %v1001 = vrot.slane %v1000, 4
        %v1002 = vadd.f32 %v1000, %v1001
        %v1003 = vrot.slane %v1002, 2
        %v1004 = vadd.f32 %v1002, %v1003
        %v1005 = vrot.slane %v1004, 1
        %v1006 = vadd.f32 %v1004, %v1005
        %s1007 = vtos %v1006
        %v1008 = vstv %s1007
        %1009 = vst [vmem:[%s411] sm:$0xff] %v1008
        %p1010 = scmp.lt.s32.totalorder %s26, 2
        %s1011 = scalar_select %p1010, %s26, 2
        %s1012 = smul.addr %s1011, 8
        %s1013 = scalar_lea.vmem %s9, %s1012
        %p1014 = scmp.lt.s32.totalorder %s26, 2
        %s1015 = scalar_select %p1014, %s26, 2
        %s1016 = smul.addr %s1015, 8
        %s1017 = scalar_lea.vmem %s10, %s1016
        // Predicated region
        $region69: #{rlp_forward.1} parent=55 // pred_check
          %p1018 = pneg %p238
        $region70: #{rlp_forward.1} parent=55 // pred_check_branch
          %1020 = sbr.rel (%p1018) target = $region72
        $region71: #{rlp_forward.1} parent=55 // pred_region
          _
        $region72: #{rlp_forward.1} parent=55 // pred_fallthru
          _
        // Predicated region
        $region73: #{rlp_forward.1} parent=55 // pred_check
          %p1021 = pneg %p264
        $region74: #{rlp_forward.1} parent=55 // pred_check_branch
          %1023 = sbr.rel (%p1021) target = $region76
        $region75: #{rlp_forward.1} parent=55 // pred_region
          _
        $region76: #{rlp_forward.1} parent=55 // pred_fallthru
          _
      $region56: #{rlp_forward.1} parent=5 // pred_fallthru
        _
      %p1024 = scmp.le.s32.totalorder 2, %s21
      // Predicated region
      $region77: #{rlp_forward.1} parent=5 // pred_check
        %p1025 = pneg %p1024
      $region78: #{rlp_forward.1} parent=5 // pred_check_branch
        %1027 = sbr.rel (%p1025) target = $region80
      $region79: #{rlp_forward.1} parent=5 // pred_region
        %s1028 = ssub.s32 %s21, 2
        // Predicated region
        $region81: #{rlp_forward.1} parent=79 // pred_check
          %p1029 = pneg %p244
        $region82: #{rlp_forward.1} parent=79 // pred_check_branch
          %1031 = sbr.rel (%p1029) target = $region84
        $region83: #{rlp_forward.1} parent=79 // pred_region
          %p1032 = scmp.lt.s32.totalorder %s27, 2
          %s1033 = scalar_select %p1032, %s27, 2
          %s1034 = smul.addr %s1033, 8
          %s1035 = scalar_lea.vmem %s9, %s1034
        $region84: #{rlp_forward.1} parent=79 // pred_fallthru
          _
        // Predicated region
        $region85: #{rlp_forward.1} parent=79 // pred_check
          %p1036 = pneg %p270
        $region86: #{rlp_forward.1} parent=79 // pred_check_branch
          %1038 = sbr.rel (%p1036) target = $region88
        $region87: #{rlp_forward.1} parent=79 // pred_region
          %p1039 = scmp.lt.s32.totalorder %s27, 2
          %s1040 = scalar_select %p1039, %s27, 2
          %s1041 = smul.addr %s1040, 8
          %s1042 = scalar_lea.vmem %s10, %s1041
        $region88: #{rlp_forward.1} parent=79 // pred_fallthru
          _
      $region80: #{rlp_forward.1} parent=5 // pred_fallthru
        _
    $region6: #{rlp_forward.1} parent=1 // loop_footer
      %s25 = sadd.s32 1, %s21
    $region7: #{rlp_forward.1} parent=1 // loop_footer_branch
      %20 = sbr.rel target = $region3
    $region8: #{rlp_forward.1} parent=1 // loop_exit
      _
    %1043 = vsyncpa [#allocation4], 1
    %s1044 = scalar_lea.sflag [#allocation4], 1
    %1045 = vsyncpa %s1044, 1
    %1046 = vsyncpa [#allocation6], 1

</llo_original>
